<compile_context>
chip_gen: v7x
topology: tpu7x:2x2x1
jax: 0.10.0
libtpu: 0.0.40
codegen_flags: <defaults>
</compile_context>

<pallas_src>
import jax
import jax.numpy as jnp
from jax.experimental import pallas as pl
from jax.experimental.pallas import tpu as pltpu


def _round_up(n, m):
    return ((n + m - 1) // m) * m


def _make_kernel(act_dtype):
    """act_dtype: dtype for the VPU/EUP math (bf16 on v6e/v7x, f32 on v5e)."""
    mxu_dtype = jnp.bfloat16

    def kernel(x_ref,
               w1_ref, b1_ref,
               w2_ref, b2_ref,
               w3_ref, b3_ref,
               w4_ref, b4_ref,
               out_ref):
        # x block: (8, TB) bf16, batch on lanes.  Weights pre-scaled so each
        # hidden layer is just tanh(W @ x + b)  (sigmoid affine already folded).
        x = x_ref[...]

        t1 = jnp.tanh(
            jnp.dot(w1_ref[...], x, preferred_element_type=act_dtype)
            + b1_ref[...])                                   # (16, TB)
        t2 = jnp.tanh(
            jnp.dot(w2_ref[...], t1.astype(mxu_dtype),
                    preferred_element_type=act_dtype)
            + b2_ref[...])                                   # (64, TB)
        t3 = jnp.tanh(
            jnp.dot(w3_ref[...], t2.astype(mxu_dtype),
                    preferred_element_type=act_dtype)
            + b3_ref[...])                                   # (128, TB)

        # Final Linear(128,1) on the MXU (it has huge slack here); f32 accum.
        y = jnp.dot(w4_ref[...], t3.astype(mxu_dtype),
                    preferred_element_type=jnp.float32) + b4_ref[...]   # (1, TB)

        out_ref[...] = y.astype(out_ref.dtype)

    return kernel


def _prep_weights(params, act_dtype):
    """Fold sigmoid(z)=0.5*tanh(z/2)+0.5 into the weights and transpose to
    feature-major (out, in) layout.  params stored as torch-equivalent with
    W: (in, out), b: (1, out)."""
    bf16 = jnp.bfloat16

    # Layer 1: t1 = tanh(x @ (W1/2) + b1/2)
    w1 = (0.5 * params["w1"]).T                       # (16, 6)
    w1 = jnp.pad(w1, ((0, 0), (0, 2)))                # (16, 8) pad K 6->8
    b1 = (0.5 * params["b1"]).T                       # (16, 1)

    # Layer k>=2 consumes h_{k-1} = 0.5*t_{k-1} + 0.5:
    #   t_k = tanh(t_{k-1} @ (Wk/4) + colsum(Wk)/4 + bk/2)
    w2 = (0.25 * params["w2"]).T                      # (64, 16)
    b2 = (0.25 * jnp.sum(params["w2"], axis=0, keepdims=True)
          + 0.5 * params["b2"]).T                     # (64, 1)

    w3 = (0.25 * params["w3"]).T                      # (128, 64)
    b3 = (0.25 * jnp.sum(params["w3"], axis=0, keepdims=True)
          + 0.5 * params["b3"]).T                     # (128, 1)

    # Output layer (no sigmoid): y = t3 @ (W4/2) + colsum(W4)/2 + b4
    w4 = (0.5 * params["w4"]).T                       # (1, 128)
    b4 = (0.5 * jnp.sum(params["w4"], axis=0, keepdims=True)
          + params["b4"])                             # (1, 1)

    return (w1.astype(bf16), b1.astype(act_dtype),
            w2.astype(bf16), b2.astype(act_dtype),
            w3.astype(bf16), b3.astype(act_dtype),
            w4.astype(bf16), b4.astype(jnp.float32))


def h_regression_forward(x, params, *, tb=2048, act_dtype=None):
    """x: (B, 6) float32.  Returns (B, 1) float32."""
    B = x.shape[0]

    if act_dtype is None:
        # bf16 VPU/EUP exists on v6e/v7x; v5e (and older) keep f32 elementwise.
        kind = jax.devices()[0].device_kind.lower()
        act_dtype = jnp.bfloat16 if ("v6" in kind or "v7" in kind) else jnp.float32

    # Batch lives on the lane axis -> tile must be a multiple of 128.
    TB = min(_round_up(tb, 128), _round_up(B, 128))
    num_tiles = pl.cdiv(B, TB)
    B_pad = num_tiles * TB

    # Feature-major x: (B,6) -> zero-pad to (B_pad, 8) -> (8, B_pad) bf16.
    xT = jnp.pad(x, ((0, B_pad - B), (0, 2))).T.astype(jnp.bfloat16)

    weight_args = _prep_weights(params, act_dtype)
    args = (xT,) + weight_args

    def resident(a):
        # Full block + constant index_map -> stays VMEM-resident across steps.
        return pl.BlockSpec(a.shape, lambda i: (0, 0))

    in_specs = [pl.BlockSpec((8, TB), lambda i: (0, i))] + \
               [resident(a) for a in weight_args]

    out = pl.pallas_call(
        _make_kernel(act_dtype),
        out_shape=jax.ShapeDtypeStruct((1, B_pad), jnp.float32),
        grid=(num_tiles,),
        in_specs=in_specs,
        out_specs=pl.BlockSpec((1, TB), lambda i: (0, i)),   # lane-dense output
        compiler_params=pltpu.CompilerParams(
            dimension_semantics=("parallel",)),
    )(*args)

    return out[0, :B][:, None]


def init_params(key):
    """torch Linear(i, o) has W: (o, i), b: (o,).  Stored transposed: W (i, o),
    b (1, o); torch default uniform init bounds."""
    dims = [(6, 16), (16, 64), (64, 128), (128, 1)]
    params = {}
    keys = jax.random.split(key, 2 * len(dims))
    for idx, (din, dout) in enumerate(dims):
        bound = 1.0 / jnp.sqrt(jnp.float32(din))
        w = jax.random.uniform(keys[2 * idx], (din, dout),
                               minval=-bound, maxval=bound, dtype=jnp.float32)
        b = jax.random.uniform(keys[2 * idx + 1], (1, dout),
                               minval=-bound, maxval=bound, dtype=jnp.float32)
        params[f"w{idx + 1}"] = w
        params[f"b{idx + 1}"] = b
    return params


def reference_forward(x, params):
    h = x
    h = jax.nn.sigmoid(h @ params["w1"] + params["b1"])
    h = jax.nn.sigmoid(h @ params["w2"] + params["b2"])
    h = jax.nn.sigmoid(h @ params["w3"] + params["b3"])
    return h @ params["w4"] + params["b4"]


if __name__ == "__main__":
    key = jax.random.PRNGKey(0)
    pkey, xkey = jax.random.split(key)
    params = init_params(pkey)

    B = 300                      # deliberately NOT a multiple of 128
    x = jax.random.normal(xkey, (B, 6), dtype=jnp.float32)
    ref = reference_forward(x, params)

    # bf16 MXU weights (+ bf16 activation math on v6e/v7x) vs f32 reference.
    tol = 3e-2

    # 1) Default path: big tile -> whole (padded) batch in a single grid step.
    out1 = jax.block_until_ready(h_regression_forward(x, params))
    assert out1.shape == (B, 1)
    err1 = float(jnp.max(jnp.abs(out1 - ref)))
    assert err1 < tol, f"single-step path max abs err {err1}"

    # 2) Multi-tile pipelined path (TB=128, grid=(3,), padded tail tile).
    out2 = jax.block_until_ready(h_regression_forward(x, params, tb=128))
    err2 = float(jnp.max(jnp.abs(out2 - ref)))
    assert err2 < tol, f"multi-tile path max abs err {err2}"

    # 3) Explicit f32 activation-math path (the v5e code path), on any chip.
    out3 = jax.block_until_ready(
        h_regression_forward(x, params, tb=256, act_dtype=jnp.float32))
    err3 = float(jnp.max(jnp.abs(out3 - ref)))
    assert err3 < tol, f"f32-activation path max abs err {err3}"

    print("KERNEL_OK")
</pallas_src>

<mosaic_0001>
module attributes {stable_mosaic.version = 11 : i64} {
  func.func @kernel(%arg0: i32, %arg1: memref<8x384xbf16, #tpu.memory_space<vmem>>, %arg2: memref<16x8xbf16, #tpu.memory_space<vmem>>, %arg3: memref<16x1xf32, #tpu.memory_space<vmem>>, %arg4: memref<64x16xbf16, #tpu.memory_space<vmem>>, %arg5: memref<64x1xf32, #tpu.memory_space<vmem>>, %arg6: memref<128x64xbf16, #tpu.memory_space<vmem>>, %arg7: memref<128x1xf32, #tpu.memory_space<vmem>>, %arg8: memref<1x128xbf16, #tpu.memory_space<vmem>>, %arg9: memref<1x1xf32, #tpu.memory_space<vmem>>, %arg10: memref<1x384xf32, #tpu.memory_space<vmem>>) attributes {dimension_semantics = [#tpu.dimension_semantics<parallel>], iteration_bounds = array<i64: 1>, scalar_prefetch = 0 : i64, scratch_operands = 0 : i64, tpu.core_type = #tpu.core_type<tc>, window_params = [{transform_indices = @transform_0, window_bounds = array<i64: 8, 384>}, {pipeline_mode = #tpu.pipeline_mode<synchronous>, transform_indices = @transform_1, window_bounds = array<i64: 16, 8>}, {pipeline_mode = #tpu.pipeline_mode<synchronous>, transform_indices = @transform_2, window_bounds = array<i64: 16, 1>}, {pipeline_mode = #tpu.pipeline_mode<synchronous>, transform_indices = @transform_3, window_bounds = array<i64: 64, 16>}, {pipeline_mode = #tpu.pipeline_mode<synchronous>, transform_indices = @transform_4, window_bounds = array<i64: 64, 1>}, {pipeline_mode = #tpu.pipeline_mode<synchronous>, transform_indices = @transform_5, window_bounds = array<i64: 128, 64>}, {pipeline_mode = #tpu.pipeline_mode<synchronous>, transform_indices = @transform_6, window_bounds = array<i64: 128, 1>}, {pipeline_mode = #tpu.pipeline_mode<synchronous>, transform_indices = @transform_7, window_bounds = array<i64: 1, 128>}, {pipeline_mode = #tpu.pipeline_mode<synchronous>, transform_indices = @transform_8, window_bounds = array<i64: 1, 1>}, {transform_indices = @transform_9, window_bounds = array<i64: 1, 384>}]} {
    %c0 = arith.constant 0 : index
    %c0_0 = arith.constant 0 : index
    %0 = vector.load %arg1[%c0, %c0_0] : memref<8x384xbf16, #tpu.memory_space<vmem>>, vector<8x384xbf16>
    %c0_1 = arith.constant 0 : index
    %c0_2 = arith.constant 0 : index
    %1 = vector.load %arg2[%c0_1, %c0_2] : memref<16x8xbf16, #tpu.memory_space<vmem>>, vector<16x8xbf16>
    %cst = arith.constant dense<0.000000e+00> : vector<16x384xf32>
    %2 = tpu.matmul %1, %0, %cst {dimension_numbers = #tpu.dot_dimension_numbers<[1], [0], [0], [1], [0, 0, 1, 1], [], []>} : vector<16x8xbf16>, vector<8x384xbf16>, vector<16x384xf32> -> vector<16x384xf32>
    %c0_3 = arith.constant 0 : index
    %c0_4 = arith.constant 0 : index
    %3 = vector.load %arg3[%c0_3, %c0_4] : memref<16x1xf32, #tpu.memory_space<vmem>>, vector<16x1xf32>
    %4 = vector.broadcast %3 : vector<16x1xf32> to vector<16x384xf32>
    %5 = arith.addf %2, %4 : vector<16x384xf32>
    %6 = math.tanh %5 : vector<16x384xf32>
    %c0_5 = arith.constant 0 : index
    %c0_6 = arith.constant 0 : index
    %7 = vector.load %arg4[%c0_5, %c0_6] : memref<64x16xbf16, #tpu.memory_space<vmem>>, vector<64x16xbf16>
    %8 = arith.truncf %6 : vector<16x384xf32> to vector<16x384xbf16>
    %cst_7 = arith.constant dense<0.000000e+00> : vector<64x384xf32>
    %9 = tpu.matmul %7, %8, %cst_7 {dimension_numbers = #tpu.dot_dimension_numbers<[1], [0], [0], [1], [0, 0, 1, 1], [], []>} : vector<64x16xbf16>, vector<16x384xbf16>, vector<64x384xf32> -> vector<64x384xf32>
    %c0_8 = arith.constant 0 : index
    %c0_9 = arith.constant 0 : index
    %10 = vector.load %arg5[%c0_8, %c0_9] : memref<64x1xf32, #tpu.memory_space<vmem>>, vector<64x1xf32>
    %11 = vector.broadcast %10 : vector<64x1xf32> to vector<64x384xf32>
    %12 = arith.addf %9, %11 : vector<64x384xf32>
    %13 = math.tanh %12 : vector<64x384xf32>
    %c0_10 = arith.constant 0 : index
    %c0_11 = arith.constant 0 : index
    %14 = vector.load %arg6[%c0_10, %c0_11] : memref<128x64xbf16, #tpu.memory_space<vmem>>, vector<128x64xbf16>
    %15 = arith.truncf %13 : vector<64x384xf32> to vector<64x384xbf16>
    %cst_12 = arith.constant dense<0.000000e+00> : vector<128x384xf32>
    %16 = tpu.matmul %14, %15, %cst_12 {dimension_numbers = #tpu.dot_dimension_numbers<[1], [0], [0], [1], [0, 0, 1, 1], [], []>} : vector<128x64xbf16>, vector<64x384xbf16>, vector<128x384xf32> -> vector<128x384xf32>
    %c0_13 = arith.constant 0 : index
    %c0_14 = arith.constant 0 : index
    %17 = vector.load %arg7[%c0_13, %c0_14] : memref<128x1xf32, #tpu.memory_space<vmem>>, vector<128x1xf32>
    %18 = vector.broadcast %17 : vector<128x1xf32> to vector<128x384xf32>
    %19 = arith.addf %16, %18 : vector<128x384xf32>
    %20 = math.tanh %19 : vector<128x384xf32>
    %c0_15 = arith.constant 0 : index
    %c0_16 = arith.constant 0 : index
    %21 = vector.load %arg8[%c0_15, %c0_16] : memref<1x128xbf16, #tpu.memory_space<vmem>>, vector<1x128xbf16>
    %22 = arith.truncf %20 : vector<128x384xf32> to vector<128x384xbf16>
    %cst_17 = arith.constant dense<0.000000e+00> : vector<1x384xf32>
    %23 = tpu.matmul %21, %22, %cst_17 {dimension_numbers = #tpu.dot_dimension_numbers<[1], [0], [0], [1], [0, 0, 1, 1], [], []>} : vector<1x128xbf16>, vector<128x384xbf16>, vector<1x384xf32> -> vector<1x384xf32>
    %c0_18 = arith.constant 0 : index
    %c0_19 = arith.constant 0 : index
    %24 = vector.load %arg9[%c0_18, %c0_19] : memref<1x1xf32, #tpu.memory_space<vmem>>, vector<1x1xf32>
    %25 = vector.broadcast %24 : vector<1x1xf32> to vector<1x384xf32>
    %26 = arith.addf %23, %25 : vector<1x384xf32>
    %c0_20 = arith.constant 0 : index
    %c0_21 = arith.constant 0 : index
    %27 = vector.load %arg10[%c0_20, %c0_21] : memref<1x384xf32, #tpu.memory_space<vmem>>, vector<1x384xf32>
    tpu.vector_store %arg10[%c0_20, %c0_21], %26 {strides = array<i32>} : memref<1x384xf32, #tpu.memory_space<vmem>>, vector<1x384xf32>,
    return
  }
  func.func @transform_0(%arg0: i32) -> (i32, i32) {
    %c0_i32 = arith.constant 0 : i32
    %c0_i32_0 = arith.constant 0 : i32
    return %c0_i32, %arg0 : i32, i32
  }
  func.func @transform_1(%arg0: i32) -> (i32, i32) {
    %c0_i32 = arith.constant 0 : i32
    %c0_i32_0 = arith.constant 0 : i32
    %c0_i32_1 = arith.constant 0 : i32
    return %c0_i32, %c0_i32_0 : i32, i32
  }
  func.func @transform_2(%arg0: i32) -> (i32, i32) {
    %c0_i32 = arith.constant 0 : i32
    %c0_i32_0 = arith.constant 0 : i32
    %c0_i32_1 = arith.constant 0 : i32
    return %c0_i32, %c0_i32_0 : i32, i32
  }
  func.func @transform_3(%arg0: i32) -> (i32, i32) {
    %c0_i32 = arith.constant 0 : i32
    %c0_i32_0 = arith.constant 0 : i32
    %c0_i32_1 = arith.constant 0 : i32
    return %c0_i32, %c0_i32_0 : i32, i32
  }
  func.func @transform_4(%arg0: i32) -> (i32, i32) {
    %c0_i32 = arith.constant 0 : i32
    %c0_i32_0 = arith.constant 0 : i32
    %c0_i32_1 = arith.constant 0 : i32
    return %c0_i32, %c0_i32_0 : i32, i32
  }
  func.func @transform_5(%arg0: i32) -> (i32, i32) {
    %c0_i32 = arith.constant 0 : i32
    %c0_i32_0 = arith.constant 0 : i32
    %c0_i32_1 = arith.constant 0 : i32
    return %c0_i32, %c0_i32_0 : i32, i32
  }
  func.func @transform_6(%arg0: i32) -> (i32, i32) {
    %c0_i32 = arith.constant 0 : i32
    %c0_i32_0 = arith.constant 0 : i32
    %c0_i32_1 = arith.constant 0 : i32
    return %c0_i32, %c0_i32_0 : i32, i32
  }
  func.func @transform_7(%arg0: i32) -> (i32, i32) {
    %c0_i32 = arith.constant 0 : i32
    %c0_i32_0 = arith.constant 0 : i32
    %c0_i32_1 = arith.constant 0 : i32
    return %c0_i32, %c0_i32_0 : i32, i32
  }
  func.func @transform_8(%arg0: i32) -> (i32, i32) {
    %c0_i32 = arith.constant 0 : i32
    %c0_i32_0 = arith.constant 0 : i32
    %c0_i32_1 = arith.constant 0 : i32
    return %c0_i32, %c0_i32_0 : i32, i32
  }
  func.func @transform_9(%arg0: i32) -> (i32, i32) {
    %c0_i32 = arith.constant 0 : i32
    %c0_i32_0 = arith.constant 0 : i32
    return %c0_i32, %arg0 : i32, i32
  }
}

</mosaic_0001>

<llo_original>
// kernel: tpu_custom_call.1
$region0: #{tpu_custom_call.1}
  #allocation0 [shape = 'u32[]', space=smem, size = 0x4, offset = 0x4, fixed_abs, tag = 'smem constant byte address 0x4 - core index']
  #allocation1 [shape = 'u32[144,128]{1,0:T(1,128)}', space=vmem, size = 0x12000, scoped, tag = 'internal scratch']
  #allocation2 [shape = 'f32[1,1]{1,0:T(1,128)S(1)}', space=vmem, size = 0x200, scoped, tag = 'scoped memory for tpu_custom_call.1']
  %s0 = inlined_call_operand.vmem [shape: bf16[8,384], index: 0, kind: input, shape index: {}]
  %s1 = inlined_call_operand.vmem [shape: bf16[16,8], index: 1, kind: input, shape index: {}]
  %s2 = inlined_call_operand.vmem [shape: f32[16,1], index: 2, kind: input, shape index: {}]
  %s3 = inlined_call_operand.vmem [shape: bf16[64,16], index: 3, kind: input, shape index: {}]
  %s4 = inlined_call_operand.vmem [shape: f32[64,1], index: 4, kind: input, shape index: {}]
  %s5 = inlined_call_operand.vmem [shape: bf16[128,64], index: 5, kind: input, shape index: {}]
  %s6 = inlined_call_operand.vmem [shape: f32[128,1], index: 6, kind: input, shape index: {}]
  %s7 = inlined_call_operand.vmem [shape: bf16[1,128], index: 7, kind: input, shape index: {}]
  %s8 = inlined_call_operand.<no memory space> [shape: f32[1,1], index: 8, kind: input, shape index: {}]
  %s9 = inlined_call_operand.hbm [shape: f32[1,384], index: 9, kind: output, shape index: {}]
  %s10 = sld [smem:[#allocation0]]
  $region46: #{tpu_custom_call.1} parent=0
    _
  %s12 = ssub.s32 1, %s10
  %s13 = scalar_select 0, %s12, %s10
  %v14 = vstv %s8
  %15 = vst [vmem:[#allocation2] sm:$0x1] %v14
  $region1: #{tpu_custom_call.1} parent=0
    #allocation3 [shape = 'u8[1536]{0}', space=vmem, size = 0x800, scoped, tag = 'output window, operand 0, single buffered']
    #allocation4 [shape = 's32[1]{0}', space=sflag, size = 0x4, scoped, tag = 'scoped memory for tpu_custom_call.1']
    %16 = vsyncpa [#allocation4], 0
    // Predicated region
    $region2: #{tpu_custom_call.1} parent=1 // pred_check
      _
    $region3: #{tpu_custom_call.1} parent=1 // pred_check_branch
      %18 = sbr.rel (0) target = $region5
    $region4: #{tpu_custom_call.1} parent=1 // pred_region
      _
    $region5: #{tpu_custom_call.1} parent=1 // pred_fallthru
      _
    // Predicated region
    $region6: #{tpu_custom_call.1} parent=1 // pred_check
      _
    $region7: #{tpu_custom_call.1} parent=1 // pred_check_branch
      %20 = sbr.rel (0) target = $region9
    $region8: #{tpu_custom_call.1} parent=1 // pred_region
      _
    $region9: #{tpu_custom_call.1} parent=1 // pred_fallthru
      _
    // Predicated region
    $region10: #{tpu_custom_call.1} parent=1 // pred_check
      _
    $region11: #{tpu_custom_call.1} parent=1 // pred_check_branch
      %22 = sbr.rel (0) target = $region13
    $region12: #{tpu_custom_call.1} parent=1 // pred_region
      _
    $region13: #{tpu_custom_call.1} parent=1 // pred_fallthru
      _
    // Predicated region
    $region14: #{tpu_custom_call.1} parent=1 // pred_check
      _
    $region15: #{tpu_custom_call.1} parent=1 // pred_check_branch
      %24 = sbr.rel (0) target = $region17
    $region16: #{tpu_custom_call.1} parent=1 // pred_region
      _
    $region17: #{tpu_custom_call.1} parent=1 // pred_fallthru
      _
    // Predicated region
    $region18: #{tpu_custom_call.1} parent=1 // pred_check
      _
    $region19: #{tpu_custom_call.1} parent=1 // pred_check_branch
      %26 = sbr.rel (0) target = $region21
    $region20: #{tpu_custom_call.1} parent=1 // pred_region
      _
    $region21: #{tpu_custom_call.1} parent=1 // pred_fallthru
      _
    // Predicated region
    $region22: #{tpu_custom_call.1} parent=1 // pred_check
      _
    $region23: #{tpu_custom_call.1} parent=1 // pred_check_branch
      %28 = sbr.rel (0) target = $region25
    $region24: #{tpu_custom_call.1} parent=1 // pred_region
      _
    $region25: #{tpu_custom_call.1} parent=1 // pred_fallthru
      _
    // Predicated region
    $region26: #{tpu_custom_call.1} parent=1 // pred_check
      _
    $region27: #{tpu_custom_call.1} parent=1 // pred_check_branch
      %30 = sbr.rel (0) target = $region29
    $region28: #{tpu_custom_call.1} parent=1 // pred_region
      _
    $region29: #{tpu_custom_call.1} parent=1 // pred_fallthru
      _
    // Predicated region
    $region30: #{tpu_custom_call.1} parent=1 // pred_check
      _
    $region31: #{tpu_custom_call.1} parent=1 // pred_check_branch
      %32 = sbr.rel (0) target = $region33
    $region32: #{tpu_custom_call.1} parent=1 // pred_region
      _
    $region33: #{tpu_custom_call.1} parent=1 // pred_fallthru
      _
    // Predicated region
    $region34: #{tpu_custom_call.1} parent=1 // pred_check
      _
    $region35: #{tpu_custom_call.1} parent=1 // pred_check_branch
      %34 = sbr.rel (0) target = $region37
    $region36: #{tpu_custom_call.1} parent=1 // pred_region
      _
    $region37: #{tpu_custom_call.1} parent=1 // pred_fallthru
      _
    %v36 = vld [vmem:[%s0] sm:$0xff]
    %v37 = vld [vmem:[%s0 + $0x8] sm:$0xf]
    %v38 = vld [vmem:[%s1] sm:$0xf]
    %v39 = vld [vmem:[%s1 + $0x4] sm:$0xf]
    %v40 = vld [vmem:[%s2] sm:$0xff]
    %v41 = vld [vmem:[%s2 + $0x8] sm:$0xff]
    %43 = vset.pattern.permute.xlu0 0
    %44 = vperm.xlu0 %43, %v40
    %v45 = vpop.permute.xlu0 %44
    %48 = vset.pattern.permute.xlu0 0
    %49 = vperm.xlu0 %48, %v41
    %v50 = vpop.permute.xlu0 %49
    %v54 = vunpack.c.l.b16 %v38
    %v55 = vunpack.c.l.b16 %v39
    %v56 = vpack.c.b16 %v55, %v54
    %v59 = vunpack.c.l.b16 %v36
    %v60 = vunpack.c.h.b16 %v36
    %v61 = vunpack.c.l.b16 %v37
    %v62 = vpack.c.b16 %v59, %v59
    %v63 = vpack.c.b16 %v60, %v60
    %v64 = vpack.c.b16 %v61, %v61
    %vm65 = vcmask 64512
    %v67 = vsel %vm65, %v56, 0
    %vm69 = vcmask 1043456
    %v71 = vsel %vm69, %v62, 0
    %v74 = vsel %vm69, %v63, 0
    %v77 = vsel %vm69, %v64, 0
    %79 = vmatprep.subr.bf16.mxu0 %v74
    %80 = vmatpush1.bf16.msra.mxu0 %v71
    %81 = vmatprep.subr.bf16.mxu0 0
    %82 = vmatpush1.bf16.msra.mxu0 0
    %83 = vmatprep.subr.bf16.mxu0 0
    %84 = vmatpush1.bf16.msra.mxu0 0
    %85 = vmatprep.subr.bf16.mxu0 0
    %86 = vmatpush1.bf16.msra.mxu0 0
    %87 = vmatprep.subr.bf16.mxu0 0
    %88 = vmatpush1.bf16.msra.mxu0 0
    %89 = vmatprep.subr.bf16.mxu0 0
    %90 = vmatpush1.bf16.msra.mxu0 0
    %91 = vmatprep.subr.bf16.mxu0 0
    %92 = vmatpush1.bf16.msra.mxu0 0
    %93 = vmatprep.subr.bf16.mxu0 0
    %94 = vmatpush1.bf16.msra.mxu0 0
    %95 = vmatprep.subr.bf16.mxu0 0
    %96 = vmatpush1.bf16.msra.mxu0 0
    %97 = vmatprep.subr.bf16.mxu0 0
    %98 = vmatpush1.bf16.msra.mxu0 0
    %99 = vmatprep.subr.bf16.mxu0 0
    %100 = vmatpush1.bf16.msra.mxu0 0
    %101 = vmatprep.subr.bf16.mxu0 0
    %102 = vmatpush1.bf16.msra.mxu0 0
    %103 = vmatprep.subr.bf16.mxu0 0
    %104 = vmatpush1.bf16.msra.mxu0 0
    %105 = vmatprep.subr.bf16.mxu0 0
    %106 = vmatpush1.bf16.msra.mxu0 0
    %107 = vmatprep.subr.bf16.mxu0 0
    %108 = vmatpush1.bf16.msra.mxu0 0
    %109 = vmatprep.subr.bf16.mxu0 0
    %110 = vmatpush1.bf16.msra.mxu0 0
    %111 = vmatprep.mubr.bf16.mxu0 0
    %112 = vmatmul.mubr.bf16.gmra.mrb[0].mxu0 %v67
    %v113 = vpop.f32.mrb[0].mxu0
    %v114 = vadd.f32 %v45, %v113
    %v115 = vpop.f32.mrb[0].mxu0
    %v116 = vadd.f32 %v45, %v115
    %v117 = vpop.f32.mrb[0].mxu0
    %v118 = vadd.f32 %v50, %v117
    %v119 = vpop.f32.mrb[0].mxu0
    %v120 = vadd.f32 %v50, %v119
    %121 = vdwg.mxu0
    %122 = vmatprep.subr.bf16.mxu0 0
    %123 = vmatpush1.bf16.msra.mxu0 %v77
    %124 = vmatprep.subr.bf16.mxu0 0
    %125 = vmatpush1.bf16.msra.mxu0 0
    %126 = vmatprep.subr.bf16.mxu0 0
    %127 = vmatpush1.bf16.msra.mxu0 0
    %128 = vmatprep.subr.bf16.mxu0 0
    %129 = vmatpush1.bf16.msra.mxu0 0
    %130 = vmatprep.subr.bf16.mxu0 0
    %131 = vmatpush1.bf16.msra.mxu0 0
    %132 = vmatprep.subr.bf16.mxu0 0
    %133 = vmatpush1.bf16.msra.mxu0 0
    %134 = vmatprep.subr.bf16.mxu0 0
    %135 = vmatpush1.bf16.msra.mxu0 0
    %136 = vmatprep.subr.bf16.mxu0 0
    %137 = vmatpush1.bf16.msra.mxu0 0
    %138 = vmatprep.subr.bf16.mxu0 0
    %139 = vmatpush1.bf16.msra.mxu0 0
    %140 = vmatprep.subr.bf16.mxu0 0
    %141 = vmatpush1.bf16.msra.mxu0 0
    %142 = vmatprep.subr.bf16.mxu0 0
    %143 = vmatpush1.bf16.msra.mxu0 0
    %144 = vmatprep.subr.bf16.mxu0 0
    %145 = vmatpush1.bf16.msra.mxu0 0
    %146 = vmatprep.subr.bf16.mxu0 0
    %147 = vmatpush1.bf16.msra.mxu0 0
    %148 = vmatprep.subr.bf16.mxu0 0
    %149 = vmatpush1.bf16.msra.mxu0 0
    %150 = vmatprep.subr.bf16.mxu0 0
    %151 = vmatpush1.bf16.msra.mxu0 0
    %152 = vmatprep.subr.bf16.mxu0 0
    %153 = vmatpush1.bf16.msra.mxu0 0
    %154 = vmatprep.mubr.bf16.mxu0 0
    %155 = vmatmul.mubr.bf16.gmra.mrb[0].mxu0 %v67
    %v156 = vpop.f32.mrb[0].mxu0
    %v157 = vadd.f32 %v45, %v156
    %v158 = vpop.f32.mrb[0].mxu0
    %v159 = vpop.f32.mrb[0].mxu0
    %v160 = vadd.f32 %v50, %v159
    %v161 = vpop.f32.mrb[0].mxu0
    %162 = vdwg.mxu0
    %v163 = vtanh.pop %v114
    %v164 = vtanh.pop %v116
    %v165 = vtanh.pop %v157
    %v166 = vtanh.pop %v118
    %v167 = vtanh.pop %v120
    %v168 = vtanh.pop %v160
    %v169 = vld [vmem:[%s3] sm:$0xf]
    %v170 = vld [vmem:[%s3 + $0x4] sm:$0xf]
    %v171 = vld [vmem:[%s3 + $0x8] sm:$0xf]
    %v172 = vld [vmem:[%s3 + $0xc] sm:$0xf]
    %v173 = vld [vmem:[%s3 + $0x10] sm:$0xf]
    %v174 = vld [vmem:[%s3 + $0x14] sm:$0xf]
    %v175 = vld [vmem:[%s3 + $0x18] sm:$0xf]
    %v176 = vld [vmem:[%s3 + $0x1c] sm:$0xf]
    %v177 = vpack.c.bf16 %v166, %v163
    %v178 = vpack.c.bf16 %v167, %v164
    %v179 = vpack.c.bf16 %v168, %v165
    %v180 = vld [vmem:[%s4] sm:$0xff]
    %v181 = vld [vmem:[%s4 + $0x8] sm:$0xff]
    %v182 = vld [vmem:[%s4 + $0x10] sm:$0xff]
    %v183 = vld [vmem:[%s4 + $0x18] sm:$0xff]
    %v184 = vld [vmem:[%s4 + $0x20] sm:$0xff]
    %v185 = vld [vmem:[%s4 + $0x28] sm:$0xff]
    %v186 = vld [vmem:[%s4 + $0x30] sm:$0xff]
    %v187 = vld [vmem:[%s4 + $0x38] sm:$0xff]
    %189 = vset.pattern.permute.xlu0 0
    %190 = vperm.xlu0 %189, %v180
    %v191 = vpop.permute.xlu0 %190
    %194 = vset.pattern.permute.xlu0 0
    %195 = vperm.xlu0 %194, %v181
    %v196 = vpop.permute.xlu0 %195
    %199 = vset.pattern.permute.xlu0 0
    %200 = vperm.xlu0 %199, %v182
    %v201 = vpop.permute.xlu0 %200
    %204 = vset.pattern.permute.xlu0 0
    %205 = vperm.xlu0 %204, %v183
    %v206 = vpop.permute.xlu0 %205
    %209 = vset.pattern.permute.xlu0 0
    %210 = vperm.xlu0 %209, %v184
    %v211 = vpop.permute.xlu0 %210
    %214 = vset.pattern.permute.xlu0 0
    %215 = vperm.xlu0 %214, %v185
    %v216 = vpop.permute.xlu0 %215
    %219 = vset.pattern.permute.xlu0 0
    %220 = vperm.xlu0 %219, %v186
    %v221 = vpop.permute.xlu0 %220
    %224 = vset.pattern.permute.xlu0 0
    %225 = vperm.xlu0 %224, %v187
    %v226 = vpop.permute.xlu0 %225
    %v236 = vunpack.c.l.b16 %v169
    %v237 = vunpack.c.l.b16 %v170
    %v238 = vunpack.c.l.b16 %v171
    %v239 = vunpack.c.l.b16 %v172
    %v240 = vunpack.c.l.b16 %v173
    %v241 = vunpack.c.l.b16 %v174
    %v242 = vunpack.c.l.b16 %v175
    %v243 = vunpack.c.l.b16 %v176
    %v244 = vpack.c.b16 %v237, %v236
    %v245 = vpack.c.b16 %v239, %v238
    %v246 = vpack.c.b16 %v241, %v240
    %v247 = vpack.c.b16 %v243, %v242
    %vm248 = vcmask 130048
    %v250 = vsel %vm248, %v244, 0
    %v253 = vsel %vm248, %v245, 0
    %v256 = vsel %vm248, %v246, 0
    %v259 = vsel %vm248, %v247, 0
    %261 = vmatprep.subr.bf16.mxu0 %v178
    %262 = vmatpush1.bf16.msra.mxu0 %v177
    %263 = vmatprep.subr.bf16.mxu0 0
    %264 = vmatpush1.bf16.msra.mxu0 0
    %265 = vmatprep.subr.bf16.mxu0 0
    %266 = vmatpush1.bf16.msra.mxu0 0
    %267 = vmatprep.subr.bf16.mxu0 0
    %268 = vmatpush1.bf16.msra.mxu0 0
    %269 = vmatprep.subr.bf16.mxu0 0
    %270 = vmatpush1.bf16.msra.mxu0 0
    %271 = vmatprep.subr.bf16.mxu0 0
    %272 = vmatpush1.bf16.msra.mxu0 0
    %273 = vmatprep.subr.bf16.mxu0 0
    %274 = vmatpush1.bf16.msra.mxu0 0
    %275 = vmatprep.subr.bf16.mxu0 0
    %276 = vmatpush1.bf16.msra.mxu0 0
    %277 = vmatprep.subr.bf16.mxu0 0
    %278 = vmatpush1.bf16.msra.mxu0 0
    %279 = vmatprep.subr.bf16.mxu0 0
    %280 = vmatpush1.bf16.msra.mxu0 0
    %281 = vmatprep.subr.bf16.mxu0 0
    %282 = vmatpush1.bf16.msra.mxu0 0
    %283 = vmatprep.subr.bf16.mxu0 0
    %284 = vmatpush1.bf16.msra.mxu0 0
    %285 = vmatprep.subr.bf16.mxu0 0
    %286 = vmatpush1.bf16.msra.mxu0 0
    %287 = vmatprep.subr.bf16.mxu0 0
    %288 = vmatpush1.bf16.msra.mxu0 0
    %289 = vmatprep.subr.bf16.mxu0 0
    %290 = vmatpush1.bf16.msra.mxu0 0
    %291 = vmatprep.subr.bf16.mxu0 0
    %292 = vmatpush1.bf16.msra.mxu0 0
    %293 = vmatprep.mubr.bf16.mxu0 0
    %294 = vmatmul.mubr.bf16.gmra.mrb[0].mxu0 %v250
    %v295 = vpop.f32.mrb[0].mxu0
    %v296 = vadd.f32 %v191, %v295
    %v297 = vpop.f32.mrb[0].mxu0
    %v298 = vadd.f32 %v191, %v297
    %v299 = vpop.f32.mrb[0].mxu0
    %v300 = vadd.f32 %v196, %v299
    %v301 = vpop.f32.mrb[0].mxu0
    %v302 = vadd.f32 %v196, %v301
    %303 = vmatprep.mubr.bf16.mxu0 0
    %304 = vmatmul.mubr.bf16.gmra.mrb[0].mxu0 %v253
    %v305 = vpop.f32.mrb[0].mxu0
    %v306 = vadd.f32 %v201, %v305
    %v307 = vpop.f32.mrb[0].mxu0
    %v308 = vadd.f32 %v201, %v307
    %v309 = vpop.f32.mrb[0].mxu0
    %v310 = vadd.f32 %v206, %v309
    %v311 = vpop.f32.mrb[0].mxu0
    %v312 = vadd.f32 %v206, %v311
    %313 = vmatprep.mubr.bf16.mxu0 0
    %314 = vmatmul.mubr.bf16.gmra.mrb[0].mxu0 %v256
    %v315 = vpop.f32.mrb[0].mxu0
    %v316 = vadd.f32 %v211, %v315
    %v317 = vpop.f32.mrb[0].mxu0
    %v318 = vadd.f32 %v211, %v317
    %v319 = vpop.f32.mrb[0].mxu0
    %v320 = vadd.f32 %v216, %v319
    %v321 = vpop.f32.mrb[0].mxu0
    %v322 = vadd.f32 %v216, %v321
    %323 = vmatprep.mubr.bf16.mxu0 0
    %324 = vmatmul.mubr.bf16.gmra.mrb[0].mxu0 %v259
    %v325 = vpop.f32.mrb[0].mxu0
    %v326 = vadd.f32 %v221, %v325
    %v327 = vpop.f32.mrb[0].mxu0
    %v328 = vadd.f32 %v221, %v327
    %v329 = vpop.f32.mrb[0].mxu0
    %v330 = vadd.f32 %v226, %v329
    %v331 = vpop.f32.mrb[0].mxu0
    %v332 = vadd.f32 %v226, %v331
    %333 = vdwg.mxu0
    %334 = vmatprep.subr.bf16.mxu0 0
    %335 = vmatpush1.bf16.msra.mxu0 %v179
    %336 = vmatprep.subr.bf16.mxu0 0
    %337 = vmatpush1.bf16.msra.mxu0 0
    %338 = vmatprep.subr.bf16.mxu0 0
    %339 = vmatpush1.bf16.msra.mxu0 0
    %340 = vmatprep.subr.bf16.mxu0 0
    %341 = vmatpush1.bf16.msra.mxu0 0
    %342 = vmatprep.subr.bf16.mxu0 0
    %343 = vmatpush1.bf16.msra.mxu0 0
    %344 = vmatprep.subr.bf16.mxu0 0
    %345 = vmatpush1.bf16.msra.mxu0 0
    %346 = vmatprep.subr.bf16.mxu0 0
    %347 = vmatpush1.bf16.msra.mxu0 0
    %348 = vmatprep.subr.bf16.mxu0 0
    %349 = vmatpush1.bf16.msra.mxu0 0
    %350 = vmatprep.subr.bf16.mxu0 0
    %351 = vmatpush1.bf16.msra.mxu0 0
    %352 = vmatprep.subr.bf16.mxu0 0
    %353 = vmatpush1.bf16.msra.mxu0 0
    %354 = vmatprep.subr.bf16.mxu0 0
    %355 = vmatpush1.bf16.msra.mxu0 0
    %356 = vmatprep.subr.bf16.mxu0 0
    %357 = vmatpush1.bf16.msra.mxu0 0
    %358 = vmatprep.subr.bf16.mxu0 0
    %359 = vmatpush1.bf16.msra.mxu0 0
    %360 = vmatprep.subr.bf16.mxu0 0
    %361 = vmatpush1.bf16.msra.mxu0 0
    %362 = vmatprep.subr.bf16.mxu0 0
    %363 = vmatpush1.bf16.msra.mxu0 0
    %364 = vmatprep.subr.bf16.mxu0 0
    %365 = vmatpush1.bf16.msra.mxu0 0
    %366 = vmatprep.mubr.bf16.mxu0 0
    %367 = vmatmul.mubr.bf16.gmra.mrb[0].mxu0 %v250
    %v368 = vpop.f32.mrb[0].mxu0
    %v369 = vadd.f32 %v191, %v368
    %v370 = vpop.f32.mrb[0].mxu0
    %v371 = vpop.f32.mrb[0].mxu0
    %v372 = vadd.f32 %v196, %v371
    %v373 = vpop.f32.mrb[0].mxu0
    %374 = vmatprep.mubr.bf16.mxu0 0
    %375 = vmatmul.mubr.bf16.gmra.mrb[0].mxu0 %v253
    %v376 = vpop.f32.mrb[0].mxu0
    %v377 = vadd.f32 %v201, %v376
    %v378 = vpop.f32.mrb[0].mxu0
    %v379 = vpop.f32.mrb[0].mxu0
    %v380 = vadd.f32 %v206, %v379
    %v381 = vpop.f32.mrb[0].mxu0
    %382 = vmatprep.mubr.bf16.mxu0 0
    %383 = vmatmul.mubr.bf16.gmra.mrb[0].mxu0 %v256
    %v384 = vpop.f32.mrb[0].mxu0
    %v385 = vadd.f32 %v211, %v384
    %v386 = vpop.f32.mrb[0].mxu0
    %v387 = vpop.f32.mrb[0].mxu0
    %v388 = vadd.f32 %v216, %v387
    %v389 = vpop.f32.mrb[0].mxu0
    %390 = vmatprep.mubr.bf16.mxu0 0
    %391 = vmatmul.mubr.bf16.gmra.mrb[0].mxu0 %v259
    %v392 = vpop.f32.mrb[0].mxu0
    %v393 = vadd.f32 %v221, %v392
    %v394 = vpop.f32.mrb[0].mxu0
    %v395 = vpop.f32.mrb[0].mxu0
    %v396 = vadd.f32 %v226, %v395
    %v397 = vpop.f32.mrb[0].mxu0
    %398 = vdwg.mxu0
    %v399 = vtanh.pop %v296
    %v400 = vtanh.pop %v298
    %v401 = vtanh.pop %v369
    %v402 = vtanh.pop %v300
    %v403 = vtanh.pop %v302
    %v404 = vtanh.pop %v372
    %v405 = vtanh.pop %v306
    %v406 = vtanh.pop %v308
    %v407 = vtanh.pop %v377
    %v408 = vtanh.pop %v310
    %v409 = vtanh.pop %v312
    %v410 = vtanh.pop %v380
    %v411 = vtanh.pop %v316
    %v412 = vtanh.pop %v318
    %v413 = vtanh.pop %v385
    %v414 = vtanh.pop %v320
    %v415 = vtanh.pop %v322
    %v416 = vtanh.pop %v388
    %v417 = vtanh.pop %v326
    %v418 = vtanh.pop %v328
    %v419 = vtanh.pop %v393
    %v420 = vtanh.pop %v330
    %v421 = vtanh.pop %v332
    %v422 = vtanh.pop %v396
    %v423 = vld [vmem:[%s5] sm:$0xf]
    %v424 = vld [vmem:[%s5 + $0x4] sm:$0xf]
    %v425 = vld [vmem:[%s5 + $0x8] sm:$0xf]
    %v426 = vld [vmem:[%s5 + $0xc] sm:$0xf]
    %v427 = vld [vmem:[%s5 + $0x10] sm:$0xf]
    %v428 = vld [vmem:[%s5 + $0x14] sm:$0xf]
    %v429 = vld [vmem:[%s5 + $0x18] sm:$0xf]
    %v430 = vld [vmem:[%s5 + $0x1c] sm:$0xf]
    %v431 = vld [vmem:[%s5 + $0x20] sm:$0xf]
    %v432 = vld [vmem:[%s5 + $0x24] sm:$0xf]
    %v433 = vld [vmem:[%s5 + $0x28] sm:$0xf]
    %v434 = vld [vmem:[%s5 + $0x2c] sm:$0xf]
    %v435 = vld [vmem:[%s5 + $0x30] sm:$0xf]
    %v436 = vld [vmem:[%s5 + $0x34] sm:$0xf]
    %v437 = vld [vmem:[%s5 + $0x38] sm:$0xf]
    %v438 = vld [vmem:[%s5 + $0x3c] sm:$0xf]
    %v439 = vpack.c.bf16 %v402, %v399
    %v440 = vpack.c.bf16 %v403, %v400
    %v441 = vpack.c.bf16 %v404, %v401
    %v442 = vpack.c.bf16 %v408, %v405
    %v443 = vpack.c.bf16 %v409, %v406
    %v444 = vpack.c.bf16 %v410, %v407
    %v445 = vpack.c.bf16 %v414, %v411
    %v446 = vpack.c.bf16 %v415, %v412
    %v447 = vpack.c.bf16 %v416, %v413
    %v448 = vpack.c.bf16 %v420, %v417
    %v449 = vpack.c.bf16 %v421, %v418
    %v450 = vpack.c.bf16 %v422, %v419
    %v451 = vld [vmem:[%s6] sm:$0xff]
    %v452 = vld [vmem:[%s6 + $0x8] sm:$0xff]
    %v453 = vld [vmem:[%s6 + $0x10] sm:$0xff]
    %v454 = vld [vmem:[%s6 + $0x18] sm:$0xff]
    %v455 = vld [vmem:[%s6 + $0x20] sm:$0xff]
    %v456 = vld [vmem:[%s6 + $0x28] sm:$0xff]
    %v457 = vld [vmem:[%s6 + $0x30] sm:$0xff]
    %v458 = vld [vmem:[%s6 + $0x38] sm:$0xff]
    %v459 = vld [vmem:[%s6 + $0x40] sm:$0xff]
    %v460 = vld [vmem:[%s6 + $0x48] sm:$0xff]
    %v461 = vld [vmem:[%s6 + $0x50] sm:$0xff]
    %v462 = vld [vmem:[%s6 + $0x58] sm:$0xff]
    %v463 = vld [vmem:[%s6 + $0x60] sm:$0xff]
    %v464 = vld [vmem:[%s6 + $0x68] sm:$0xff]
    %v465 = vld [vmem:[%s6 + $0x70] sm:$0xff]
    %v466 = vld [vmem:[%s6 + $0x78] sm:$0xff]
    %468 = vset.pattern.permute.xlu0 0
    %469 = vperm.xlu0 %468, %v451
    %v470 = vpop.permute.xlu0 %469
    %473 = vset.pattern.permute.xlu0 0
    %474 = vperm.xlu0 %473, %v452
    %v475 = vpop.permute.xlu0 %474
    %478 = vset.pattern.permute.xlu0 0
    %479 = vperm.xlu0 %478, %v453
    %v480 = vpop.permute.xlu0 %479
    %483 = vset.pattern.permute.xlu0 0
    %484 = vperm.xlu0 %483, %v454
    %v485 = vpop.permute.xlu0 %484
    %488 = vset.pattern.permute.xlu0 0
    %489 = vperm.xlu0 %488, %v455
    %v490 = vpop.permute.xlu0 %489
    %493 = vset.pattern.permute.xlu0 0
    %494 = vperm.xlu0 %493, %v456
    %v495 = vpop.permute.xlu0 %494
    %498 = vset.pattern.permute.xlu0 0
    %499 = vperm.xlu0 %498, %v457
    %v500 = vpop.permute.xlu0 %499
    %503 = vset.pattern.permute.xlu0 0
    %504 = vperm.xlu0 %503, %v458
    %v505 = vpop.permute.xlu0 %504
    %508 = vset.pattern.permute.xlu0 0
    %509 = vperm.xlu0 %508, %v459
    %v510 = vpop.permute.xlu0 %509
    %513 = vset.pattern.permute.xlu0 0
    %514 = vperm.xlu0 %513, %v460
    %v515 = vpop.permute.xlu0 %514
    %518 = vset.pattern.permute.xlu0 0
    %519 = vperm.xlu0 %518, %v461
    %v520 = vpop.permute.xlu0 %519
    %523 = vset.pattern.permute.xlu0 0
    %524 = vperm.xlu0 %523, %v462
    %v525 = vpop.permute.xlu0 %524
    %528 = vset.pattern.permute.xlu0 0
    %529 = vperm.xlu0 %528, %v463
    %v530 = vpop.permute.xlu0 %529
    %533 = vset.pattern.permute.xlu0 0
    %534 = vperm.xlu0 %533, %v464
    %v535 = vpop.permute.xlu0 %534
    %538 = vset.pattern.permute.xlu0 0
    %539 = vperm.xlu0 %538, %v465
    %v540 = vpop.permute.xlu0 %539
    %543 = vset.pattern.permute.xlu0 0
    %544 = vperm.xlu0 %543, %v466
    %v545 = vpop.permute.xlu0 %544
    %v563 = vunpack.c.l.b16 %v423
    %v564 = vunpack.c.l.b16 %v424
    %v565 = vunpack.c.l.b16 %v425
    %v566 = vunpack.c.l.b16 %v426
    %v567 = vunpack.c.l.b16 %v427
    %v568 = vunpack.c.l.b16 %v428
    %v569 = vunpack.c.l.b16 %v429
    %v570 = vunpack.c.l.b16 %v430
    %v571 = vunpack.c.l.b16 %v431
    %v572 = vunpack.c.l.b16 %v432
    %v573 = vunpack.c.l.b16 %v433
    %v574 = vunpack.c.l.b16 %v434
    %v575 = vunpack.c.l.b16 %v435
    %v576 = vunpack.c.l.b16 %v436
    %v577 = vunpack.c.l.b16 %v437
    %v578 = vunpack.c.l.b16 %v438
    %v579 = vpack.c.b16 %v564, %v563
    %v580 = vpack.c.b16 %v566, %v565
    %v581 = vpack.c.b16 %v568, %v567
    %v582 = vpack.c.b16 %v570, %v569
    %v583 = vpack.c.b16 %v572, %v571
    %v584 = vpack.c.b16 %v574, %v573
    %v585 = vpack.c.b16 %v576, %v575
    %v586 = vpack.c.b16 %v578, %v577
    %vm587 = vcmask 523264
    %v589 = vsel %vm587, %v579, 0
    %v592 = vsel %vm587, %v580, 0
    %v595 = vsel %vm587, %v581, 0
    %v598 = vsel %vm587, %v582, 0
    %v601 = vsel %vm587, %v583, 0
    %v604 = vsel %vm587, %v584, 0
    %v607 = vsel %vm587, %v585, 0
    %v610 = vsel %vm587, %v586, 0
    %612 = vmatprep.subr.bf16.mxu0 %v440
    %613 = vmatpush1.bf16.msra.mxu0 %v439
    %614 = vmatprep.subr.bf16.mxu0 %v443
    %615 = vmatpush1.bf16.msra.mxu0 %v442
    %616 = vmatprep.subr.bf16.mxu0 %v446
    %617 = vmatpush1.bf16.msra.mxu0 %v445
    %618 = vmatprep.subr.bf16.mxu0 %v449
    %619 = vmatpush1.bf16.msra.mxu0 %v448
    %620 = vmatprep.subr.bf16.mxu0 0
    %621 = vmatpush1.bf16.msra.mxu0 0
    %622 = vmatprep.subr.bf16.mxu0 0
    %623 = vmatpush1.bf16.msra.mxu0 0
    %624 = vmatprep.subr.bf16.mxu0 0
    %625 = vmatpush1.bf16.msra.mxu0 0
    %626 = vmatprep.subr.bf16.mxu0 0
    %627 = vmatpush1.bf16.msra.mxu0 0
    %628 = vmatprep.subr.bf16.mxu0 0
    %629 = vmatpush1.bf16.msra.mxu0 0
    %630 = vmatprep.subr.bf16.mxu0 0
    %631 = vmatpush1.bf16.msra.mxu0 0
    %632 = vmatprep.subr.bf16.mxu0 0
    %633 = vmatpush1.bf16.msra.mxu0 0
    %634 = vmatprep.subr.bf16.mxu0 0
    %635 = vmatpush1.bf16.msra.mxu0 0
    %636 = vmatprep.subr.bf16.mxu0 0
    %637 = vmatpush1.bf16.msra.mxu0 0
    %638 = vmatprep.subr.bf16.mxu0 0
    %639 = vmatpush1.bf16.msra.mxu0 0
    %640 = vmatprep.subr.bf16.mxu0 0
    %641 = vmatpush1.bf16.msra.mxu0 0
    %642 = vmatprep.subr.bf16.mxu0 0
    %643 = vmatpush1.bf16.msra.mxu0 0
    %644 = vmatprep.mubr.bf16.mxu0 0
    %645 = vmatmul.mubr.bf16.gmra.mrb[0].mxu0 %v589
    %v646 = vpop.f32.mrb[0].mxu0
    %v647 = vadd.f32 %v470, %v646
    %v648 = vpop.f32.mrb[0].mxu0
    %v649 = vadd.f32 %v470, %v648
    %v650 = vpop.f32.mrb[0].mxu0
    %v651 = vadd.f32 %v475, %v650
    %v652 = vpop.f32.mrb[0].mxu0
    %v653 = vadd.f32 %v475, %v652
    %654 = vmatprep.mubr.bf16.mxu0 0
    %655 = vmatmul.mubr.bf16.gmra.mrb[0].mxu0 %v592
    %v656 = vpop.f32.mrb[0].mxu0
    %v657 = vadd.f32 %v480, %v656
    %v658 = vpop.f32.mrb[0].mxu0
    %v659 = vadd.f32 %v480, %v658
    %v660 = vpop.f32.mrb[0].mxu0
    %v661 = vadd.f32 %v485, %v660
    %v662 = vpop.f32.mrb[0].mxu0
    %v663 = vadd.f32 %v485, %v662
    %664 = vmatprep.mubr.bf16.mxu0 0
    %665 = vmatmul.mubr.bf16.gmra.mrb[0].mxu0 %v595
    %v666 = vpop.f32.mrb[0].mxu0
    %v667 = vadd.f32 %v490, %v666
    %v668 = vpop.f32.mrb[0].mxu0
    %v669 = vadd.f32 %v490, %v668
    %v670 = vpop.f32.mrb[0].mxu0
    %v671 = vadd.f32 %v495, %v670
    %v672 = vpop.f32.mrb[0].mxu0
    %v673 = vadd.f32 %v495, %v672
    %674 = vmatprep.mubr.bf16.mxu0 0
    %675 = vmatmul.mubr.bf16.gmra.mrb[0].mxu0 %v598
    %v676 = vpop.f32.mrb[0].mxu0
    %v677 = vadd.f32 %v500, %v676
    %v678 = vpop.f32.mrb[0].mxu0
    %v679 = vadd.f32 %v500, %v678
    %v680 = vpop.f32.mrb[0].mxu0
    %v681 = vadd.f32 %v505, %v680
    %v682 = vpop.f32.mrb[0].mxu0
    %v683 = vadd.f32 %v505, %v682
    %684 = vmatprep.mubr.bf16.mxu0 0
    %685 = vmatmul.mubr.bf16.gmra.mrb[0].mxu0 %v601
    %v686 = vpop.f32.mrb[0].mxu0
    %v687 = vadd.f32 %v510, %v686
    %v688 = vpop.f32.mrb[0].mxu0
    %v689 = vadd.f32 %v510, %v688
    %v690 = vpop.f32.mrb[0].mxu0
    %v691 = vadd.f32 %v515, %v690
    %v692 = vpop.f32.mrb[0].mxu0
    %v693 = vadd.f32 %v515, %v692
    %694 = vmatprep.mubr.bf16.mxu0 0
    %695 = vmatmul.mubr.bf16.gmra.mrb[0].mxu0 %v604
    %v696 = vpop.f32.mrb[0].mxu0
    %v697 = vadd.f32 %v520, %v696
    %v698 = vpop.f32.mrb[0].mxu0
    %v699 = vadd.f32 %v520, %v698
    %v700 = vpop.f32.mrb[0].mxu0
    %v701 = vadd.f32 %v525, %v700
    %v702 = vpop.f32.mrb[0].mxu0
    %v703 = vadd.f32 %v525, %v702
    %704 = vmatprep.mubr.bf16.mxu0 0
    %705 = vmatmul.mubr.bf16.gmra.mrb[0].mxu0 %v607
    %v706 = vpop.f32.mrb[0].mxu0
    %v707 = vadd.f32 %v530, %v706
    %v708 = vpop.f32.mrb[0].mxu0
    %v709 = vadd.f32 %v530, %v708
    %v710 = vpop.f32.mrb[0].mxu0
    %v711 = vadd.f32 %v535, %v710
    %v712 = vpop.f32.mrb[0].mxu0
    %v713 = vadd.f32 %v535, %v712
    %714 = vmatprep.mubr.bf16.mxu0 0
    %715 = vmatmul.mubr.bf16.gmra.mrb[0].mxu0 %v610
    %v716 = vpop.f32.mrb[0].mxu0
    %v717 = vadd.f32 %v540, %v716
    %v718 = vpop.f32.mrb[0].mxu0
    %v719 = vadd.f32 %v540, %v718
    %v720 = vpop.f32.mrb[0].mxu0
    %v721 = vadd.f32 %v545, %v720
    %v722 = vpop.f32.mrb[0].mxu0
    %v723 = vadd.f32 %v545, %v722
    %724 = vdwg.mxu0
    %725 = vmatprep.subr.bf16.mxu0 0
    %726 = vmatpush1.bf16.msra.mxu0 %v441
    %727 = vmatprep.subr.bf16.mxu0 0
    %728 = vmatpush1.bf16.msra.mxu0 %v444
    %729 = vmatprep.subr.bf16.mxu0 0
    %730 = vmatpush1.bf16.msra.mxu0 %v447
    %731 = vmatprep.subr.bf16.mxu0 0
    %732 = vmatpush1.bf16.msra.mxu0 %v450
    %733 = vmatprep.subr.bf16.mxu0 0
    %734 = vmatpush1.bf16.msra.mxu0 0
    %735 = vmatprep.subr.bf16.mxu0 0
    %736 = vmatpush1.bf16.msra.mxu0 0
    %737 = vmatprep.subr.bf16.mxu0 0
    %738 = vmatpush1.bf16.msra.mxu0 0
    %739 = vmatprep.subr.bf16.mxu0 0
    %740 = vmatpush1.bf16.msra.mxu0 0
    %741 = vmatprep.subr.bf16.mxu0 0
    %742 = vmatpush1.bf16.msra.mxu0 0
    %743 = vmatprep.subr.bf16.mxu0 0
    %744 = vmatpush1.bf16.msra.mxu0 0
    %745 = vmatprep.subr.bf16.mxu0 0
    %746 = vmatpush1.bf16.msra.mxu0 0
    %747 = vmatprep.subr.bf16.mxu0 0
    %748 = vmatpush1.bf16.msra.mxu0 0
    %749 = vmatprep.subr.bf16.mxu0 0
    %750 = vmatpush1.bf16.msra.mxu0 0
    %751 = vmatprep.subr.bf16.mxu0 0
    %752 = vmatpush1.bf16.msra.mxu0 0
    %753 = vmatprep.subr.bf16.mxu0 0
    %754 = vmatpush1.bf16.msra.mxu0 0
    %755 = vmatprep.subr.bf16.mxu0 0
    %756 = vmatpush1.bf16.msra.mxu0 0
    %757 = vmatprep.mubr.bf16.mxu0 0
    %758 = vmatmul.mubr.bf16.gmra.mrb[0].mxu0 %v589
    %v759 = vpop.f32.mrb[0].mxu0
    %v760 = vadd.f32 %v470, %v759
    %v761 = vpop.f32.mrb[0].mxu0
    %v762 = vpop.f32.mrb[0].mxu0
    %v763 = vadd.f32 %v475, %v762
    %v764 = vpop.f32.mrb[0].mxu0
    %765 = vmatprep.mubr.bf16.mxu0 0
    %766 = vmatmul.mubr.bf16.gmra.mrb[0].mxu0 %v592
    %v767 = vpop.f32.mrb[0].mxu0
    %v768 = vadd.f32 %v480, %v767
    %v769 = vpop.f32.mrb[0].mxu0
    %v770 = vpop.f32.mrb[0].mxu0
    %v771 = vadd.f32 %v485, %v770
    %v772 = vpop.f32.mrb[0].mxu0
    %773 = vmatprep.mubr.bf16.mxu0 0
    %774 = vmatmul.mubr.bf16.gmra.mrb[0].mxu0 %v595
    %v775 = vpop.f32.mrb[0].mxu0
    %v776 = vadd.f32 %v490, %v775
    %v777 = vpop.f32.mrb[0].mxu0
    %v778 = vpop.f32.mrb[0].mxu0
    %v779 = vadd.f32 %v495, %v778
    %v780 = vpop.f32.mrb[0].mxu0
    %781 = vmatprep.mubr.bf16.mxu0 0
    %782 = vmatmul.mubr.bf16.gmra.mrb[0].mxu0 %v598
    %v783 = vpop.f32.mrb[0].mxu0
    %v784 = vadd.f32 %v500, %v783
    %v785 = vpop.f32.mrb[0].mxu0
    %v786 = vpop.f32.mrb[0].mxu0
    %v787 = vadd.f32 %v505, %v786
    %v788 = vpop.f32.mrb[0].mxu0
    %789 = vmatprep.mubr.bf16.mxu0 0
    %790 = vmatmul.mubr.bf16.gmra.mrb[0].mxu0 %v601
    %v791 = vpop.f32.mrb[0].mxu0
    %v792 = vadd.f32 %v510, %v791
    %v793 = vpop.f32.mrb[0].mxu0
    %v794 = vpop.f32.mrb[0].mxu0
    %v795 = vadd.f32 %v515, %v794
    %v796 = vpop.f32.mrb[0].mxu0
    %797 = vmatprep.mubr.bf16.mxu0 0
    %798 = vmatmul.mubr.bf16.gmra.mrb[0].mxu0 %v604
    %v799 = vpop.f32.mrb[0].mxu0
    %v800 = vadd.f32 %v520, %v799
    %v801 = vpop.f32.mrb[0].mxu0
    %v802 = vpop.f32.mrb[0].mxu0
    %v803 = vadd.f32 %v525, %v802
    %v804 = vpop.f32.mrb[0].mxu0
    %805 = vmatprep.mubr.bf16.mxu0 0
    %806 = vmatmul.mubr.bf16.gmra.mrb[0].mxu0 %v607
    %v807 = vpop.f32.mrb[0].mxu0
    %v808 = vadd.f32 %v530, %v807
    %v809 = vpop.f32.mrb[0].mxu0
    %v810 = vpop.f32.mrb[0].mxu0
    %v811 = vadd.f32 %v535, %v810
    %v812 = vpop.f32.mrb[0].mxu0
    %813 = vmatprep.mubr.bf16.mxu0 0
    %814 = vmatmul.mubr.bf16.gmra.mrb[0].mxu0 %v610
    %v815 = vpop.f32.mrb[0].mxu0
    %v816 = vadd.f32 %v540, %v815
    %v817 = vpop.f32.mrb[0].mxu0
    %v818 = vpop.f32.mrb[0].mxu0
    %v819 = vadd.f32 %v545, %v818
    %v820 = vpop.f32.mrb[0].mxu0
    %821 = vdwg.mxu0
    %v822 = vtanh.pop %v647
    %v823 = vtanh.pop %v649
    %v824 = vtanh.pop %v760
    %v825 = vtanh.pop %v651
    %v826 = vtanh.pop %v653
    %v827 = vtanh.pop %v763
    %v828 = vtanh.pop %v657
    %v829 = vtanh.pop %v659
    %v830 = vtanh.pop %v768
    %v831 = vtanh.pop %v661
    %v832 = vtanh.pop %v663
    %v833 = vtanh.pop %v771
    %v834 = vtanh.pop %v667
    %v835 = vtanh.pop %v669
    %v836 = vtanh.pop %v776
    %v837 = vtanh.pop %v671
    %v838 = vtanh.pop %v673
    %v839 = vtanh.pop %v779
    %v840 = vtanh.pop %v677
    %v841 = vtanh.pop %v679
    %v842 = vtanh.pop %v784
    %v843 = vtanh.pop %v681
    %v844 = vtanh.pop %v683
    %v845 = vtanh.pop %v787
    %v846 = vtanh.pop %v687
    %v847 = vtanh.pop %v689
    %v848 = vtanh.pop %v792
    %v849 = vtanh.pop %v691
    %v850 = vtanh.pop %v693
    %v851 = vtanh.pop %v795
    %v852 = vtanh.pop %v697
    %v853 = vtanh.pop %v699
    %v854 = vtanh.pop %v800
    %v855 = vtanh.pop %v701
    %v856 = vtanh.pop %v703
    %v857 = vtanh.pop %v803
    %v858 = vtanh.pop %v707
    %v859 = vtanh.pop %v709
    %v860 = vtanh.pop %v808
    %v861 = vtanh.pop %v711
    %v862 = vtanh.pop %v713
    %v863 = vtanh.pop %v811
    %v864 = vtanh.pop %v717
    %v865 = vtanh.pop %v719
    %v866 = vtanh.pop %v816
    %v867 = vtanh.pop %v721
    %v868 = vtanh.pop %v723
    %v869 = vtanh.pop %v819
    %v870 = vld [vmem:[%s7] sm:$0x1]
    %v871 = vpack.c.bf16 %v825, %v822
    %v872 = vpack.c.bf16 %v826, %v823
    %v873 = vpack.c.bf16 %v827, %v824
    %v874 = vpack.c.bf16 %v831, %v828
    %v875 = vpack.c.bf16 %v832, %v829
    %v876 = vpack.c.bf16 %v833, %v830
    %v877 = vpack.c.bf16 %v837, %v834
    %v878 = vpack.c.bf16 %v838, %v835
    %v879 = vpack.c.bf16 %v839, %v836
    %v880 = vpack.c.bf16 %v843, %v840
    %v881 = vpack.c.bf16 %v844, %v841
    %v882 = vpack.c.bf16 %v845, %v842
    %v883 = vpack.c.bf16 %v849, %v846
    %v884 = vpack.c.bf16 %v850, %v847
    %v885 = vpack.c.bf16 %v851, %v848
    %v886 = vpack.c.bf16 %v855, %v852
    %v887 = vpack.c.bf16 %v856, %v853
    %v888 = vpack.c.bf16 %v857, %v854
    %v889 = vpack.c.bf16 %v861, %v858
    %v890 = vpack.c.bf16 %v862, %v859
    %v891 = vpack.c.bf16 %v863, %v860
    %v892 = vpack.c.bf16 %v867, %v864
    %v893 = vpack.c.bf16 %v868, %v865
    %v894 = vpack.c.bf16 %v869, %v866
    %v895 = vld [vmem:[#allocation2] sm:$0x1]
    %897 = vset.pattern.permute.xlu0 0
    %898 = vperm.xlu0 %897, %v895
    %v899 = vpop.permute.xlu0 %898
    %v901 = vlaneseq
    %v902 = vshrl.u32 %v901, 7
    %v903 = vsub.s32 0, %v902
    %v904 = vrot.slane %v899, %v903
    %905 = vmatprep.subr.bf16.mxu0 %v872
    %906 = vmatpush1.bf16.msra.mxu0 %v871
    %907 = vmatprep.subr.bf16.mxu0 %v875
    %908 = vmatpush1.bf16.msra.mxu0 %v874
    %909 = vmatprep.subr.bf16.mxu0 %v878
    %910 = vmatpush1.bf16.msra.mxu0 %v877
    %911 = vmatprep.subr.bf16.mxu0 %v881
    %912 = vmatpush1.bf16.msra.mxu0 %v880
    %913 = vmatprep.subr.bf16.mxu0 %v884
    %914 = vmatpush1.bf16.msra.mxu0 %v883
    %915 = vmatprep.subr.bf16.mxu0 %v887
    %916 = vmatpush1.bf16.msra.mxu0 %v886
    %917 = vmatprep.subr.bf16.mxu0 %v890
    %918 = vmatpush1.bf16.msra.mxu0 %v889
    %919 = vmatprep.subr.bf16.mxu0 %v893
    %920 = vmatpush1.bf16.msra.mxu0 %v892
    %921 = vmatprep.subr.bf16.mxu0 0
    %922 = vmatpush1.bf16.msra.mxu0 0
    %923 = vmatprep.subr.bf16.mxu0 0
    %924 = vmatpush1.bf16.msra.mxu0 0
    %925 = vmatprep.subr.bf16.mxu0 0
    %926 = vmatpush1.bf16.msra.mxu0 0
    %927 = vmatprep.subr.bf16.mxu0 0
    %928 = vmatpush1.bf16.msra.mxu0 0
    %929 = vmatprep.subr.bf16.mxu0 0
    %930 = vmatpush1.bf16.msra.mxu0 0
    %931 = vmatprep.subr.bf16.mxu0 0
    %932 = vmatpush1.bf16.msra.mxu0 0
    %933 = vmatprep.subr.bf16.mxu0 0
    %934 = vmatpush1.bf16.msra.mxu0 0
    %935 = vmatprep.subr.bf16.mxu0 0
    %936 = vmatpush1.bf16.msra.mxu0 0
    %937 = vmatprep.mubr.bf16.mxu0 0
    %938 = vmatmul.mubr.bf16.gmra.mrb[0].mxu0 %v870
    %v939 = vpop.f32.mrb[0].mxu0
    %v940 = vadd.f32 %v904, %v939
    %v941 = vpop.f32.mrb[0].mxu0
    %v942 = vadd.f32 %v904, %v941
    %v943 = vpop.f32.mrb[0].mxu0
    %v944 = vpop.f32.mrb[0].mxu0
    %945 = vdwg.mxu0
    %946 = vmatprep.subr.bf16.mxu0 0
    %947 = vmatpush1.bf16.msra.mxu0 %v873
    %948 = vmatprep.subr.bf16.mxu0 0
    %949 = vmatpush1.bf16.msra.mxu0 %v876
    %950 = vmatprep.subr.bf16.mxu0 0
    %951 = vmatpush1.bf16.msra.mxu0 %v879
    %952 = vmatprep.subr.bf16.mxu0 0
    %953 = vmatpush1.bf16.msra.mxu0 %v882
    %954 = vmatprep.subr.bf16.mxu0 0
    %955 = vmatpush1.bf16.msra.mxu0 %v885
    %956 = vmatprep.subr.bf16.mxu0 0
    %957 = vmatpush1.bf16.msra.mxu0 %v888
    %958 = vmatprep.subr.bf16.mxu0 0
    %959 = vmatpush1.bf16.msra.mxu0 %v891
    %960 = vmatprep.subr.bf16.mxu0 0
    %961 = vmatpush1.bf16.msra.mxu0 %v894
    %962 = vmatprep.subr.bf16.mxu0 0
    %963 = vmatpush1.bf16.msra.mxu0 0
    %964 = vmatprep.subr.bf16.mxu0 0
    %965 = vmatpush1.bf16.msra.mxu0 0
    %966 = vmatprep.subr.bf16.mxu0 0
    %967 = vmatpush1.bf16.msra.mxu0 0
    %968 = vmatprep.subr.bf16.mxu0 0
    %969 = vmatpush1.bf16.msra.mxu0 0
    %970 = vmatprep.subr.bf16.mxu0 0
    %971 = vmatpush1.bf16.msra.mxu0 0
    %972 = vmatprep.subr.bf16.mxu0 0
    %973 = vmatpush1.bf16.msra.mxu0 0
    %974 = vmatprep.subr.bf16.mxu0 0
    %975 = vmatpush1.bf16.msra.mxu0 0
    %976 = vmatprep.subr.bf16.mxu0 0
    %977 = vmatpush1.bf16.msra.mxu0 0
    %978 = vmatprep.mubr.bf16.mxu0 0
    %979 = vmatmul.mubr.bf16.gmra.mrb[0].mxu0 %v870
    %v980 = vpop.f32.mrb[0].mxu0
    %v981 = vadd.f32 %v904, %v980
    %v982 = vpop.f32.mrb[0].mxu0
    %v983 = vpop.f32.mrb[0].mxu0
    %v984 = vpop.f32.mrb[0].mxu0
    %985 = vdwg.mxu0
    %v989 = vcombine.low %v940, %v942
    %v991 = vunpack.c.l.s4 1966171168
    %v992 = vunpack.c.0.s8 %v991
    %v993 = vlaneseq
    %v994 = vshrl.u32 %v993, 7
    %v995 = vsub.s32 %v992, %v994
    %v996 = vrot.slane %v989, %v995
    %v998 = vunpack.c.l.s4 1966171168
    %v999 = vunpack.c.0.s8 %v998
    %v1000 = vlaneseq
    %v1001 = vshrl.u32 %v1000, 7
    %v1002 = vsub.s32 %v999, %v1001
    %v1003 = vrot.slane %v981, %v1002
    %v1004 = vcombine.low %v996, %v1003
    %v1006 = vunpack.c.l.s4 1966171168
    %v1007 = vunpack.c.0.s8 %v1006
    %v1008 = vlaneseq
    %v1009 = vshrl.u32 %v1008, 7
    %v1010 = vsub.s32 %v1007, %v1009
    %v1011 = vrot.slane %v1004, %v1010
    %v1013 = vlaneseq
    %vm1014 = vcmp.ge.s32.totalorder %v1013, 0
    %vm1015 = vcmp.lt.s32.totalorder %v1013, 384
    %vm1016 = vmand %vm1014, %vm1015
    %1017 = vst.msk [vmem:[#allocation3] sm:$0x7] %vm1016, %v1011
    // Predicated region
    $region38: #{tpu_custom_call.1} parent=1 // pred_check
      _
    $region39: #{tpu_custom_call.1} parent=1 // pred_check_branch
      %1019 = sbr.rel (0) target = $region41
    $region40: #{tpu_custom_call.1} parent=1 // pred_region
      %s1021 = ssub.s32 48, 48
      %1022 = vsyncadd [#allocation4], %s1021
      %s1024 = sshll.u32 [#allocation3], 4
      %s1025 = int_to_ptr.vmem [resolvable:$true] %s1024
      %1027 = dma.vmem_to_hbm [thread:$0]  %s1025, 48, %s9, [#allocation4]
    $region41: #{tpu_custom_call.1} parent=1 // pred_fallthru
      _
    // Predicated region
    $region42: #{tpu_custom_call.1} parent=1 // pred_check
      _
    $region43: #{tpu_custom_call.1} parent=1 // pred_check_branch
      %1029 = sbr.rel (0) target = $region45
    $region44: #{tpu_custom_call.1} parent=1 // pred_region
      %1030 = dma.done [#allocation4], 48
    $region45: #{tpu_custom_call.1} parent=1 // pred_fallthru
      _
    %1031 = vsyncpa [#allocation4], 1

</llo_original>
